<compile_context>
chip_gen: v6e
topology: v6e:2x2x1
jax: 0.10.0
libtpu: 0.0.40
codegen_flags: <defaults>
</compile_context>

<pallas_src>
import functools

import jax
import jax.numpy as jnp
from jax.experimental import pallas as pl
from jax.experimental.pallas import tpu as pltpu


# Padded dimensions (all lane-aligned to 128).
F_IN_PAD = 384     # 310 -> 3*128
H1 = 128           # feature hidden / feature output
H2 = 128           # class_classifier hidden (64 -> 128)
N_OUT_PAD = 128    # class output (3 -> 128)
N_OUT = 3


def _round_up(x, m):
    return (x + m - 1) // m * m


def _mlp_kernel(x_ref,
                w1_ref, b1_ref,
                w2_ref, b2_ref,
                w3_ref, b3_ref,
                w4_ref, b4_ref,
                w5_ref, b5_ref,
                out_ref):
    x = x_ref[...]  # bf16 [TILE_B, 384]

    # feature: Linear(310->128) -> ReLU -> Linear(128->128)   (no ReLU after 2nd)
    h = jnp.dot(x, w1_ref[...], preferred_element_type=jnp.float32) + b1_ref[...]
    h = jnp.maximum(h, 0.0).astype(jnp.bfloat16)
    feat = jnp.dot(h, w2_ref[...], preferred_element_type=jnp.float32) + b2_ref[...]
    feat = feat.astype(jnp.bfloat16)

    # class_classifier:
    # Linear(128->64) -> ReLU -> Linear(64->64) -> ReLU -> Linear(64->3) -> ReLU
    # (all widths padded to 128 lanes; padding lanes stay exactly zero)
    c = jnp.dot(feat, w3_ref[...], preferred_element_type=jnp.float32) + b3_ref[...]
    c = jnp.maximum(c, 0.0).astype(jnp.bfloat16)
    c = jnp.dot(c, w4_ref[...], preferred_element_type=jnp.float32) + b4_ref[...]
    c = jnp.maximum(c, 0.0).astype(jnp.bfloat16)
    c = jnp.dot(c, w5_ref[...], preferred_element_type=jnp.float32) + b5_ref[...]
    c = jnp.maximum(c, 0.0)

    out_ref[...] = c.astype(out_ref.dtype)  # lane-dense [TILE_B, 128] store


def _pack_params(params):
    """Pad weights/biases to lane-aligned shapes; weights to bf16, biases f32.

    Biases are zero-padded (never garbage) so padded lanes stay zero.
    """
    (w1, b1), (w2, b2), (w3, b3), (w4, b4), (w5, b5) = params

    def pad_w(w, k_pad, n_pad):
        k, n = w.shape
        return jnp.pad(w, ((0, k_pad - k), (0, n_pad - n))).astype(jnp.bfloat16)

    def pad_b(b, n_pad):
        n = b.shape[-1]
        return jnp.pad(b, ((0, 0), (0, n_pad - n))).astype(jnp.float32)

    return [
        pad_w(w1, F_IN_PAD, H1), pad_b(b1, H1),
        pad_w(w2, H1, H1),       pad_b(b2, H1),
        pad_w(w3, H1, H2),       pad_b(b3, H2),
        pad_w(w4, H2, H2),       pad_b(b4, H2),
        pad_w(w5, H2, N_OUT_PAD), pad_b(b5, N_OUT_PAD),
    ]


@functools.partial(jax.jit, static_argnames=("tile_b",))
def cnn_model_forward(x, params, *, tile_b=512):
    """x: [B, 310] float32. params: list of (W [in,out], b [1,out]) f32 tuples.

    Returns class_output [B, 3] float32.
    """
    B, f_in = x.shape

    # Tile over the batch; for small B shrink the tile to round_up(B, 8).
    tile_b = min(tile_b, _round_up(B, 8))
    b_pad = _round_up(B, tile_b)

    # Zero-pad batch rows and the feature dim (310 -> 384); cast to bf16.
    x_p = jnp.pad(x, ((0, b_pad - B), (0, F_IN_PAD - f_in))).astype(jnp.bfloat16)

    flat = _pack_params(params)
    grid = (b_pad // tile_b,)

    # x/out tiles advance along the batch grid; weights/biases are resident
    # (constant index_map) and fetched into VMEM only once.
    x_spec = pl.BlockSpec((tile_b, F_IN_PAD), lambda i: (i, 0))
    out_spec = pl.BlockSpec((tile_b, N_OUT_PAD), lambda i: (i, 0))
    const_specs = [pl.BlockSpec(a.shape, lambda i: (0, 0)) for a in flat]

    flops = 2 * b_pad * (F_IN_PAD * H1 + H1 * H1 + H1 * H2 + H2 * H2 + H2 * N_OUT_PAD)
    bytes_accessed = (x_p.size * 2
                      + sum(a.size * a.dtype.itemsize for a in flat)
                      + b_pad * N_OUT_PAD * 4)

    out_padded = pl.pallas_call(
        _mlp_kernel,
        out_shape=jax.ShapeDtypeStruct((b_pad, N_OUT_PAD), jnp.float32),
        grid=grid,
        in_specs=[x_spec] + const_specs,
        out_specs=out_spec,
        compiler_params=pltpu.CompilerParams(
            dimension_semantics=("parallel",),   # v7x: shard batch over 2 TCs
        ),
        cost_estimate=pl.CostEstimate(
            flops=flops, bytes_accessed=bytes_accessed, transcendentals=0),
    )(x_p, *flat)

    # Strip batch padding and the lane padding of the 3-wide output.
    return out_padded[:B, :N_OUT]


def init_params(key):
    """Deterministic init matching the PyTorch layer shapes.

    PyTorch nn.Linear(in, out) has weight [out, in]; we store W as [in, out]
    so the kernel computes x @ W + b. Biases are kept 2D ([1, out]).
    """
    dims = [(310, 128), (128, 128),          # feature
            (128, 64), (64, 64), (64, 3)]    # class_classifier
    params = []
    for i, (d_in, d_out) in enumerate(dims):
        kw, kb = jax.random.split(jax.random.fold_in(key, i))
        bound = 1.0 / jnp.sqrt(d_in)
        w = jax.random.uniform(kw, (d_in, d_out), jnp.float32, -bound, bound)
        b = jax.random.uniform(kb, (1, d_out), jnp.float32, -bound, bound)
        params.append((w, b))
    return params


def reference_forward(x, params):
    """Pure-JAX f32 reference for a sanity check."""
    (w1, b1), (w2, b2), (w3, b3), (w4, b4), (w5, b5) = params
    h = jnp.maximum(x @ w1 + b1, 0.0)
    feat = h @ w2 + b2
    c = jnp.maximum(feat @ w3 + b3, 0.0)
    c = jnp.maximum(c @ w4 + b4, 0.0)
    c = jnp.maximum(c @ w5 + b5, 0.0)
    return c


if __name__ == "__main__":
    key = jax.random.PRNGKey(0)
    kx, kp = jax.random.split(key)

    B = 8
    x = jax.random.normal(kx, (B, 310), jnp.float32)
    params = init_params(kp)

    out = cnn_model_forward(x, params)
    out = jax.block_until_ready(out)

    ref = reference_forward(x, params)
    assert out.shape == (B, 3), out.shape
    # Kernel uses bf16 inputs to the MXU (f32 accumulate) -> loose tolerance
    # vs the pure-f32 reference.
    assert jnp.allclose(out, ref, atol=3e-2, rtol=3e-2), (
        f"mismatch vs reference: max abs err {jnp.max(jnp.abs(out - ref))}")

    print("KERNEL_OK")
</pallas_src>

<mosaic_0001>
module attributes {stable_mosaic.version = 11 : i64} {
  func.func @_mlp_kernel(%arg0: i32, %arg1: memref<8x384xbf16, #tpu.memory_space<vmem>>, %arg2: memref<384x128xbf16, #tpu.memory_space<vmem>>, %arg3: memref<1x128xf32, #tpu.memory_space<vmem>>, %arg4: memref<128x128xbf16, #tpu.memory_space<vmem>>, %arg5: memref<1x128xf32, #tpu.memory_space<vmem>>, %arg6: memref<128x128xbf16, #tpu.memory_space<vmem>>, %arg7: memref<1x128xf32, #tpu.memory_space<vmem>>, %arg8: memref<128x128xbf16, #tpu.memory_space<vmem>>, %arg9: memref<1x128xf32, #tpu.memory_space<vmem>>, %arg10: memref<128x128xbf16, #tpu.memory_space<vmem>>, %arg11: memref<1x128xf32, #tpu.memory_space<vmem>>, %arg12: memref<8x128xf32, #tpu.memory_space<vmem>>) attributes {dimension_semantics = [#tpu.dimension_semantics<parallel>], iteration_bounds = array<i64: 1>, scalar_prefetch = 0 : i64, scratch_operands = 0 : i64, tpu.core_type = #tpu.core_type<tc>, window_params = [{transform_indices = @transform_0, window_bounds = array<i64: 8, 384>}, {pipeline_mode = #tpu.pipeline_mode<synchronous>, transform_indices = @transform_1, window_bounds = array<i64: 384, 128>}, {pipeline_mode = #tpu.pipeline_mode<synchronous>, transform_indices = @transform_2, window_bounds = array<i64: 1, 128>}, {pipeline_mode = #tpu.pipeline_mode<synchronous>, transform_indices = @transform_3, window_bounds = array<i64: 128, 128>}, {pipeline_mode = #tpu.pipeline_mode<synchronous>, transform_indices = @transform_4, window_bounds = array<i64: 1, 128>}, {pipeline_mode = #tpu.pipeline_mode<synchronous>, transform_indices = @transform_5, window_bounds = array<i64: 128, 128>}, {pipeline_mode = #tpu.pipeline_mode<synchronous>, transform_indices = @transform_6, window_bounds = array<i64: 1, 128>}, {pipeline_mode = #tpu.pipeline_mode<synchronous>, transform_indices = @transform_7, window_bounds = array<i64: 128, 128>}, {pipeline_mode = #tpu.pipeline_mode<synchronous>, transform_indices = @transform_8, window_bounds = array<i64: 1, 128>}, {pipeline_mode = #tpu.pipeline_mode<synchronous>, transform_indices = @transform_9, window_bounds = array<i64: 128, 128>}, {pipeline_mode = #tpu.pipeline_mode<synchronous>, transform_indices = @transform_10, window_bounds = array<i64: 1, 128>}, {transform_indices = @transform_11, window_bounds = array<i64: 8, 128>}]} {
    %c0 = arith.constant 0 : index
    %c0_0 = arith.constant 0 : index
    %0 = vector.load %arg1[%c0, %c0_0] : memref<8x384xbf16, #tpu.memory_space<vmem>>, vector<8x384xbf16>
    %c0_1 = arith.constant 0 : index
    %c0_2 = arith.constant 0 : index
    %1 = vector.load %arg2[%c0_1, %c0_2] : memref<384x128xbf16, #tpu.memory_space<vmem>>, vector<384x128xbf16>
    %cst = arith.constant dense<0.000000e+00> : vector<8x128xf32>
    %2 = tpu.matmul %0, %1, %cst {dimension_numbers = #tpu.dot_dimension_numbers<[1], [0], [0], [1], [0, 0, 1, 1], [], []>} : vector<8x384xbf16>, vector<384x128xbf16>, vector<8x128xf32> -> vector<8x128xf32>
    %c0_3 = arith.constant 0 : index
    %c0_4 = arith.constant 0 : index
    %3 = vector.load %arg3[%c0_3, %c0_4] : memref<1x128xf32, #tpu.memory_space<vmem>>, vector<1x128xf32>
    %4 = vector.broadcast %3 : vector<1x128xf32> to vector<8x128xf32>
    %5 = arith.addf %2, %4 : vector<8x128xf32>
    %cst_5 = arith.constant 0.000000e+00 : f32
    %6 = vector.broadcast %cst_5 : f32 to vector<8x128xf32>
    %7 = arith.maximumf %5, %6 : vector<8x128xf32>
    %8 = arith.truncf %7 : vector<8x128xf32> to vector<8x128xbf16>
    %c0_6 = arith.constant 0 : index
    %c0_7 = arith.constant 0 : index
    %9 = vector.load %arg4[%c0_6, %c0_7] : memref<128x128xbf16, #tpu.memory_space<vmem>>, vector<128x128xbf16>
    %cst_8 = arith.constant dense<0.000000e+00> : vector<8x128xf32>
    %10 = tpu.matmul %8, %9, %cst_8 {dimension_numbers = #tpu.dot_dimension_numbers<[1], [0], [0], [1], [0, 0, 1, 1], [], []>} : vector<8x128xbf16>, vector<128x128xbf16>, vector<8x128xf32> -> vector<8x128xf32>
    %c0_9 = arith.constant 0 : index
    %c0_10 = arith.constant 0 : index
    %11 = vector.load %arg5[%c0_9, %c0_10] : memref<1x128xf32, #tpu.memory_space<vmem>>, vector<1x128xf32>
    %12 = vector.broadcast %11 : vector<1x128xf32> to vector<8x128xf32>
    %13 = arith.addf %10, %12 : vector<8x128xf32>
    %14 = arith.truncf %13 : vector<8x128xf32> to vector<8x128xbf16>
    %c0_11 = arith.constant 0 : index
    %c0_12 = arith.constant 0 : index
    %15 = vector.load %arg6[%c0_11, %c0_12] : memref<128x128xbf16, #tpu.memory_space<vmem>>, vector<128x128xbf16>
    %cst_13 = arith.constant dense<0.000000e+00> : vector<8x128xf32>
    %16 = tpu.matmul %14, %15, %cst_13 {dimension_numbers = #tpu.dot_dimension_numbers<[1], [0], [0], [1], [0, 0, 1, 1], [], []>} : vector<8x128xbf16>, vector<128x128xbf16>, vector<8x128xf32> -> vector<8x128xf32>
    %c0_14 = arith.constant 0 : index
    %c0_15 = arith.constant 0 : index
    %17 = vector.load %arg7[%c0_14, %c0_15] : memref<1x128xf32, #tpu.memory_space<vmem>>, vector<1x128xf32>
    %18 = vector.broadcast %17 : vector<1x128xf32> to vector<8x128xf32>
    %19 = arith.addf %16, %18 : vector<8x128xf32>
    %cst_16 = arith.constant 0.000000e+00 : f32
    %20 = vector.broadcast %cst_16 : f32 to vector<8x128xf32>
    %21 = arith.maximumf %19, %20 : vector<8x128xf32>
    %22 = arith.truncf %21 : vector<8x128xf32> to vector<8x128xbf16>
    %c0_17 = arith.constant 0 : index
    %c0_18 = arith.constant 0 : index
    %23 = vector.load %arg8[%c0_17, %c0_18] : memref<128x128xbf16, #tpu.memory_space<vmem>>, vector<128x128xbf16>
    %cst_19 = arith.constant dense<0.000000e+00> : vector<8x128xf32>
    %24 = tpu.matmul %22, %23, %cst_19 {dimension_numbers = #tpu.dot_dimension_numbers<[1], [0], [0], [1], [0, 0, 1, 1], [], []>} : vector<8x128xbf16>, vector<128x128xbf16>, vector<8x128xf32> -> vector<8x128xf32>
    %c0_20 = arith.constant 0 : index
    %c0_21 = arith.constant 0 : index
    %25 = vector.load %arg9[%c0_20, %c0_21] : memref<1x128xf32, #tpu.memory_space<vmem>>, vector<1x128xf32>
    %26 = vector.broadcast %25 : vector<1x128xf32> to vector<8x128xf32>
    %27 = arith.addf %24, %26 : vector<8x128xf32>
    %cst_22 = arith.constant 0.000000e+00 : f32
    %28 = vector.broadcast %cst_22 : f32 to vector<8x128xf32>
    %29 = arith.maximumf %27, %28 : vector<8x128xf32>
    %30 = arith.truncf %29 : vector<8x128xf32> to vector<8x128xbf16>
    %c0_23 = arith.constant 0 : index
    %c0_24 = arith.constant 0 : index
    %31 = vector.load %arg10[%c0_23, %c0_24] : memref<128x128xbf16, #tpu.memory_space<vmem>>, vector<128x128xbf16>
    %cst_25 = arith.constant dense<0.000000e+00> : vector<8x128xf32>
    %32 = tpu.matmul %30, %31, %cst_25 {dimension_numbers = #tpu.dot_dimension_numbers<[1], [0], [0], [1], [0, 0, 1, 1], [], []>} : vector<8x128xbf16>, vector<128x128xbf16>, vector<8x128xf32> -> vector<8x128xf32>
    %c0_26 = arith.constant 0 : index
    %c0_27 = arith.constant 0 : index
    %33 = vector.load %arg11[%c0_26, %c0_27] : memref<1x128xf32, #tpu.memory_space<vmem>>, vector<1x128xf32>
    %34 = vector.broadcast %33 : vector<1x128xf32> to vector<8x128xf32>
    %35 = arith.addf %32, %34 : vector<8x128xf32>
    %cst_28 = arith.constant 0.000000e+00 : f32
    %36 = vector.broadcast %cst_28 : f32 to vector<8x128xf32>
    %37 = arith.maximumf %35, %36 : vector<8x128xf32>
    %c0_29 = arith.constant 0 : index
    %c0_30 = arith.constant 0 : index
    %38 = vector.load %arg12[%c0_29, %c0_30] : memref<8x128xf32, #tpu.memory_space<vmem>>, vector<8x128xf32>
    tpu.vector_store %arg12[%c0_29, %c0_30], %37 {strides = array<i32>} : memref<8x128xf32, #tpu.memory_space<vmem>>, vector<8x128xf32>,
    return
  }
  func.func @transform_0(%arg0: i32) -> (i32, i32) {
    %c0_i32 = arith.constant 0 : i32
    %c0_i32_0 = arith.constant 0 : i32
    return %arg0, %c0_i32 : i32, i32
  }
  func.func @transform_1(%arg0: i32) -> (i32, i32) {
    %c0_i32 = arith.constant 0 : i32
    %c0_i32_0 = arith.constant 0 : i32
    %c0_i32_1 = arith.constant 0 : i32
    return %c0_i32, %c0_i32_0 : i32, i32
  }
  func.func @transform_2(%arg0: i32) -> (i32, i32) {
    %c0_i32 = arith.constant 0 : i32
    %c0_i32_0 = arith.constant 0 : i32
    %c0_i32_1 = arith.constant 0 : i32
    return %c0_i32, %c0_i32_0 : i32, i32
  }
  func.func @transform_3(%arg0: i32) -> (i32, i32) {
    %c0_i32 = arith.constant 0 : i32
    %c0_i32_0 = arith.constant 0 : i32
    %c0_i32_1 = arith.constant 0 : i32
    return %c0_i32, %c0_i32_0 : i32, i32
  }
  func.func @transform_4(%arg0: i32) -> (i32, i32) {
    %c0_i32 = arith.constant 0 : i32
    %c0_i32_0 = arith.constant 0 : i32
    %c0_i32_1 = arith.constant 0 : i32
    return %c0_i32, %c0_i32_0 : i32, i32
  }
  func.func @transform_5(%arg0: i32) -> (i32, i32) {
    %c0_i32 = arith.constant 0 : i32
    %c0_i32_0 = arith.constant 0 : i32
    %c0_i32_1 = arith.constant 0 : i32
    return %c0_i32, %c0_i32_0 : i32, i32
  }
  func.func @transform_6(%arg0: i32) -> (i32, i32) {
    %c0_i32 = arith.constant 0 : i32
    %c0_i32_0 = arith.constant 0 : i32
    %c0_i32_1 = arith.constant 0 : i32
    return %c0_i32, %c0_i32_0 : i32, i32
  }
  func.func @transform_7(%arg0: i32) -> (i32, i32) {
    %c0_i32 = arith.constant 0 : i32
    %c0_i32_0 = arith.constant 0 : i32
    %c0_i32_1 = arith.constant 0 : i32
    return %c0_i32, %c0_i32_0 : i32, i32
  }
  func.func @transform_8(%arg0: i32) -> (i32, i32) {
    %c0_i32 = arith.constant 0 : i32
    %c0_i32_0 = arith.constant 0 : i32
    %c0_i32_1 = arith.constant 0 : i32
    return %c0_i32, %c0_i32_0 : i32, i32
  }
  func.func @transform_9(%arg0: i32) -> (i32, i32) {
    %c0_i32 = arith.constant 0 : i32
    %c0_i32_0 = arith.constant 0 : i32
    %c0_i32_1 = arith.constant 0 : i32
    return %c0_i32, %c0_i32_0 : i32, i32
  }
  func.func @transform_10(%arg0: i32) -> (i32, i32) {
    %c0_i32 = arith.constant 0 : i32
    %c0_i32_0 = arith.constant 0 : i32
    %c0_i32_1 = arith.constant 0 : i32
    return %c0_i32, %c0_i32_0 : i32, i32
  }
  func.func @transform_11(%arg0: i32) -> (i32, i32) {
    %c0_i32 = arith.constant 0 : i32
    %c0_i32_0 = arith.constant 0 : i32
    return %arg0, %c0_i32 : i32, i32
  }
}

</mosaic_0001>

<llo_original>
// kernel: cnn_model_forward.1
$region0: #{cnn_model_forward.1}
  #allocation0 [shape = 'u32[]', space=smem, size = 0x4, offset = 0x4, fixed_abs, tag = 'smem constant byte address 0x4 - core index']
  #allocation1 [shape = 'u32[144,128]{1,0:T(1,128)}', space=vmem, size = 0x12000, scoped, tag = 'internal scratch']
  %s0 = inlined_call_operand.vmem [shape: bf16[8,384], index: 0, kind: input, shape index: {}]
  %s1 = inlined_call_operand.vmem [shape: bf16[384,128], index: 1, kind: input, shape index: {}]
  %s2 = inlined_call_operand.vmem [shape: f32[1,128], index: 2, kind: input, shape index: {}]
  %s3 = inlined_call_operand.vmem [shape: bf16[128,128], index: 3, kind: input, shape index: {}]
  %s4 = inlined_call_operand.vmem [shape: f32[1,128], index: 4, kind: input, shape index: {}]
  %s5 = inlined_call_operand.vmem [shape: bf16[128,128], index: 5, kind: input, shape index: {}]
  %s6 = inlined_call_operand.vmem [shape: f32[1,128], index: 6, kind: input, shape index: {}]
  %s7 = inlined_call_operand.vmem [shape: bf16[128,128], index: 7, kind: input, shape index: {}]
  %s8 = inlined_call_operand.vmem [shape: f32[1,128], index: 8, kind: input, shape index: {}]
  %s9 = inlined_call_operand.vmem [shape: bf16[128,128], index: 9, kind: input, shape index: {}]
  %s10 = inlined_call_operand.vmem [shape: f32[1,128], index: 10, kind: input, shape index: {}]
  %s11 = inlined_call_operand.vmem [shape: f32[8,128], index: 11, kind: output, shape index: {}]
  %s12 = sld [smem:[#allocation0]]
  $region54: #{cnn_model_forward.1} parent=0
    _
  %s14 = ssub.s32 1, %s12
  %s15 = scalar_select 0, %s14, %s12
  // Predicated region
  $region2: #{cnn_model_forward.1} parent=0 // pred_check
    _
  $region3: #{cnn_model_forward.1} parent=0 // pred_check_branch
    %17 = sbr.rel (0) target = $region5
  $region4: #{cnn_model_forward.1} parent=0 // pred_region
    _
  $region5: #{cnn_model_forward.1} parent=0 // pred_fallthru
    _
  // Predicated region
  $region6: #{cnn_model_forward.1} parent=0 // pred_check
    _
  $region7: #{cnn_model_forward.1} parent=0 // pred_check_branch
    %19 = sbr.rel (0) target = $region9
  $region8: #{cnn_model_forward.1} parent=0 // pred_region
    _
  $region9: #{cnn_model_forward.1} parent=0 // pred_fallthru
    _
  // Predicated region
  $region10: #{cnn_model_forward.1} parent=0 // pred_check
    _
  $region11: #{cnn_model_forward.1} parent=0 // pred_check_branch
    %21 = sbr.rel (0) target = $region13
  $region12: #{cnn_model_forward.1} parent=0 // pred_region
    _
  $region13: #{cnn_model_forward.1} parent=0 // pred_fallthru
    _
  // Predicated region
  $region14: #{cnn_model_forward.1} parent=0 // pred_check
    _
  $region15: #{cnn_model_forward.1} parent=0 // pred_check_branch
    %23 = sbr.rel (0) target = $region17
  $region16: #{cnn_model_forward.1} parent=0 // pred_region
    _
  $region17: #{cnn_model_forward.1} parent=0 // pred_fallthru
    _
  // Predicated region
  $region18: #{cnn_model_forward.1} parent=0 // pred_check
    _
  $region19: #{cnn_model_forward.1} parent=0 // pred_check_branch
    %25 = sbr.rel (0) target = $region21
  $region20: #{cnn_model_forward.1} parent=0 // pred_region
    _
  $region21: #{cnn_model_forward.1} parent=0 // pred_fallthru
    _
  // Predicated region
  $region22: #{cnn_model_forward.1} parent=0 // pred_check
    _
  $region23: #{cnn_model_forward.1} parent=0 // pred_check_branch
    %27 = sbr.rel (0) target = $region25
  $region24: #{cnn_model_forward.1} parent=0 // pred_region
    _
  $region25: #{cnn_model_forward.1} parent=0 // pred_fallthru
    _
  // Predicated region
  $region26: #{cnn_model_forward.1} parent=0 // pred_check
    _
  $region27: #{cnn_model_forward.1} parent=0 // pred_check_branch
    %29 = sbr.rel (0) target = $region29
  $region28: #{cnn_model_forward.1} parent=0 // pred_region
    _
  $region29: #{cnn_model_forward.1} parent=0 // pred_fallthru
    _
  // Predicated region
  $region30: #{cnn_model_forward.1} parent=0 // pred_check
    _
  $region31: #{cnn_model_forward.1} parent=0 // pred_check_branch
    %31 = sbr.rel (0) target = $region33
  $region32: #{cnn_model_forward.1} parent=0 // pred_region
    _
  $region33: #{cnn_model_forward.1} parent=0 // pred_fallthru
    _
  // Predicated region
  $region34: #{cnn_model_forward.1} parent=0 // pred_check
    _
  $region35: #{cnn_model_forward.1} parent=0 // pred_check_branch
    %33 = sbr.rel (0) target = $region37
  $region36: #{cnn_model_forward.1} parent=0 // pred_region
    _
  $region37: #{cnn_model_forward.1} parent=0 // pred_fallthru
    _
  // Predicated region
  $region38: #{cnn_model_forward.1} parent=0 // pred_check
    _
  $region39: #{cnn_model_forward.1} parent=0 // pred_check_branch
    %35 = sbr.rel (0) target = $region41
  $region40: #{cnn_model_forward.1} parent=0 // pred_region
    _
  $region41: #{cnn_model_forward.1} parent=0 // pred_fallthru
    _
  // Predicated region
  $region42: #{cnn_model_forward.1} parent=0 // pred_check
    _
  $region43: #{cnn_model_forward.1} parent=0 // pred_check_branch
    %37 = sbr.rel (0) target = $region45
  $region44: #{cnn_model_forward.1} parent=0 // pred_region
    _
  $region45: #{cnn_model_forward.1} parent=0 // pred_fallthru
    _
  %v39 = vld [vmem:[%s0] sm:$0xff]
  %v40 = vld [vmem:[%s0 + $0x8] sm:$0xf]
  %v41 = vld [vmem:[%s1] sm:$0xf]
  %v42 = vld [vmem:[%s1 + $0x4] sm:$0xf]
  %v43 = vld [vmem:[%s1 + $0x8] sm:$0xf]
  %v44 = vld [vmem:[%s1 + $0xc] sm:$0xf]
  %v45 = vld [vmem:[%s1 + $0x10] sm:$0xf]
  %v46 = vld [vmem:[%s1 + $0x14] sm:$0xf]
  %v47 = vld [vmem:[%s1 + $0x18] sm:$0xf]
  %v48 = vld [vmem:[%s1 + $0x1c] sm:$0xf]
  %v49 = vld [vmem:[%s1 + $0x20] sm:$0xf]
  %v50 = vld [vmem:[%s1 + $0x24] sm:$0xf]
  %v51 = vld [vmem:[%s1 + $0x28] sm:$0xf]
  %v52 = vld [vmem:[%s1 + $0x2c] sm:$0xf]
  %v53 = vld [vmem:[%s1 + $0x30] sm:$0xf]
  %v54 = vld [vmem:[%s1 + $0x34] sm:$0xf]
  %v55 = vld [vmem:[%s1 + $0x38] sm:$0xf]
  %v56 = vld [vmem:[%s1 + $0x3c] sm:$0xf]
  %v57 = vld [vmem:[%s1 + $0x40] sm:$0xf]
  %v58 = vld [vmem:[%s1 + $0x44] sm:$0xf]
  %v59 = vld [vmem:[%s1 + $0x48] sm:$0xf]
  %v60 = vld [vmem:[%s1 + $0x4c] sm:$0xf]
  %v61 = vld [vmem:[%s1 + $0x50] sm:$0xf]
  %v62 = vld [vmem:[%s1 + $0x54] sm:$0xf]
  %v63 = vld [vmem:[%s1 + $0x58] sm:$0xf]
  %v64 = vld [vmem:[%s1 + $0x5c] sm:$0xf]
  %v65 = vld [vmem:[%s1 + $0x60] sm:$0xf]
  %v66 = vld [vmem:[%s1 + $0x64] sm:$0xf]
  %v67 = vld [vmem:[%s1 + $0x68] sm:$0xf]
  %v68 = vld [vmem:[%s1 + $0x6c] sm:$0xf]
  %v69 = vld [vmem:[%s1 + $0x70] sm:$0xf]
  %v70 = vld [vmem:[%s1 + $0x74] sm:$0xf]
  %v71 = vld [vmem:[%s1 + $0x78] sm:$0xf]
  %v72 = vld [vmem:[%s1 + $0x7c] sm:$0xf]
  %v73 = vld [vmem:[%s1 + $0x80] sm:$0xf]
  %v74 = vld [vmem:[%s1 + $0x84] sm:$0xf]
  %v75 = vld [vmem:[%s1 + $0x88] sm:$0xf]
  %v76 = vld [vmem:[%s1 + $0x8c] sm:$0xf]
  %v77 = vld [vmem:[%s1 + $0x90] sm:$0xf]
  %v78 = vld [vmem:[%s1 + $0x94] sm:$0xf]
  %v79 = vld [vmem:[%s1 + $0x98] sm:$0xf]
  %v80 = vld [vmem:[%s1 + $0x9c] sm:$0xf]
  %v81 = vld [vmem:[%s1 + $0xa0] sm:$0xf]
  %v82 = vld [vmem:[%s1 + $0xa4] sm:$0xf]
  %v83 = vld [vmem:[%s1 + $0xa8] sm:$0xf]
  %v84 = vld [vmem:[%s1 + $0xac] sm:$0xf]
  %v85 = vld [vmem:[%s1 + $0xb0] sm:$0xf]
  %v86 = vld [vmem:[%s1 + $0xb4] sm:$0xf]
  %v87 = vld [vmem:[%s1 + $0xb8] sm:$0xf]
  %v88 = vld [vmem:[%s1 + $0xbc] sm:$0xf]
  %v89 = vld [vmem:[%s2] sm:$0x1]
  %v91 = vlaneseq
  %v92 = vshrl.u32 %v91, 7
  %v93 = vsub.s32 0, %v92
  %v94 = vrot.slane %v89, %v93
  %v98 = vunpack.c.l.b16 %v39
  %v99 = vunpack.c.h.b16 %v39
  %v100 = vunpack.c.l.b16 %v40
  %v101 = vpack.c.b16 %v98, %v98
  %v102 = vpack.c.b16 %v99, %v99
  %v103 = vpack.c.b16 %v100, %v100
  %v155 = vunpack.c.l.b16 %v41
  %v156 = vunpack.c.l.b16 %v42
  %v157 = vunpack.c.l.b16 %v43
  %v158 = vunpack.c.l.b16 %v44
  %v159 = vunpack.c.l.b16 %v45
  %v160 = vunpack.c.l.b16 %v46
  %v161 = vunpack.c.l.b16 %v47
  %v162 = vunpack.c.l.b16 %v48
  %v163 = vunpack.c.l.b16 %v49
  %v164 = vunpack.c.l.b16 %v50
  %v165 = vunpack.c.l.b16 %v51
  %v166 = vunpack.c.l.b16 %v52
  %v167 = vunpack.c.l.b16 %v53
  %v168 = vunpack.c.l.b16 %v54
  %v169 = vunpack.c.l.b16 %v55
  %v170 = vunpack.c.l.b16 %v56
  %v171 = vunpack.c.l.b16 %v57
  %v172 = vunpack.c.l.b16 %v58
  %v173 = vunpack.c.l.b16 %v59
  %v174 = vunpack.c.l.b16 %v60
  %v175 = vunpack.c.l.b16 %v61
  %v176 = vunpack.c.l.b16 %v62
  %v177 = vunpack.c.l.b16 %v63
  %v178 = vunpack.c.l.b16 %v64
  %v179 = vunpack.c.l.b16 %v65
  %v180 = vunpack.c.l.b16 %v66
  %v181 = vunpack.c.l.b16 %v67
  %v182 = vunpack.c.l.b16 %v68
  %v183 = vunpack.c.l.b16 %v69
  %v184 = vunpack.c.l.b16 %v70
  %v185 = vunpack.c.l.b16 %v71
  %v186 = vunpack.c.l.b16 %v72
  %v187 = vunpack.c.l.b16 %v73
  %v188 = vunpack.c.l.b16 %v74
  %v189 = vunpack.c.l.b16 %v75
  %v190 = vunpack.c.l.b16 %v76
  %v191 = vunpack.c.l.b16 %v77
  %v192 = vunpack.c.l.b16 %v78
  %v193 = vunpack.c.l.b16 %v79
  %v194 = vunpack.c.l.b16 %v80
  %v195 = vunpack.c.l.b16 %v81
  %v196 = vunpack.c.l.b16 %v82
  %v197 = vunpack.c.l.b16 %v83
  %v198 = vunpack.c.l.b16 %v84
  %v199 = vunpack.c.l.b16 %v85
  %v200 = vunpack.c.l.b16 %v86
  %v201 = vunpack.c.l.b16 %v87
  %v202 = vunpack.c.l.b16 %v88
  %v203 = vpack.c.b16 %v156, %v155
  %v204 = vpack.c.b16 %v158, %v157
  %v205 = vpack.c.b16 %v160, %v159
  %v206 = vpack.c.b16 %v162, %v161
  %v207 = vpack.c.b16 %v164, %v163
  %v208 = vpack.c.b16 %v166, %v165
  %v209 = vpack.c.b16 %v168, %v167
  %v210 = vpack.c.b16 %v170, %v169
  %v211 = vpack.c.b16 %v172, %v171
  %v212 = vpack.c.b16 %v174, %v173
  %v213 = vpack.c.b16 %v176, %v175
  %v214 = vpack.c.b16 %v178, %v177
  %v215 = vpack.c.b16 %v180, %v179
  %v216 = vpack.c.b16 %v182, %v181
  %v217 = vpack.c.b16 %v184, %v183
  %v218 = vpack.c.b16 %v186, %v185
  %v219 = vpack.c.b16 %v188, %v187
  %v220 = vpack.c.b16 %v190, %v189
  %v221 = vpack.c.b16 %v192, %v191
  %v222 = vpack.c.b16 %v194, %v193
  %v223 = vpack.c.b16 %v196, %v195
  %v224 = vpack.c.b16 %v198, %v197
  %v225 = vpack.c.b16 %v200, %v199
  %v226 = vpack.c.b16 %v202, %v201
  %251 = vmatprep.subr.bf16.mxu0 0
  %252 = vmatpush1.bf16.msra.mxu0 %v210
  %253 = vmatprep.subr.bf16.mxu0 0
  %254 = vmatpush1.bf16.msra.mxu0 %v209
  %255 = vmatprep.subr.bf16.mxu0 0
  %256 = vmatpush1.bf16.msra.mxu0 %v208
  %257 = vmatprep.subr.bf16.mxu0 0
  %258 = vmatpush1.bf16.msra.mxu0 %v207
  %259 = vmatprep.subr.bf16.mxu0 0
  %260 = vmatpush1.bf16.msra.mxu0 %v206
  %261 = vmatprep.subr.bf16.mxu0 0
  %262 = vmatpush1.bf16.msra.mxu0 %v205
  %263 = vmatprep.subr.bf16.mxu0 0
  %264 = vmatpush1.bf16.msra.mxu0 %v204
  %265 = vmatprep.subr.bf16.mxu0 0
  %266 = vmatpush1.bf16.msra.mxu0 %v203
  %267 = vmatprep.subr.bf16.mxu0 0
  %268 = vmatpush2.bf16.msra.mxu0 %v218
  %269 = vmatprep.subr.bf16.mxu0 0
  %270 = vmatpush2.bf16.msra.mxu0 %v217
  %271 = vmatprep.subr.bf16.mxu0 0
  %272 = vmatpush2.bf16.msra.mxu0 %v216
  %273 = vmatprep.subr.bf16.mxu0 0
  %274 = vmatpush2.bf16.msra.mxu0 %v215
  %275 = vmatprep.subr.bf16.mxu0 0
  %276 = vmatpush2.bf16.msra.mxu0 %v214
  %277 = vmatprep.subr.bf16.mxu0 0
  %278 = vmatpush2.bf16.msra.mxu0 %v213
  %279 = vmatprep.subr.bf16.mxu0 0
  %280 = vmatpush2.bf16.msra.mxu0 %v212
  %281 = vmatprep.subr.bf16.mxu0 0
  %282 = vmatpush2.bf16.msra.mxu0 %v211
  %283 = vmatprep.mubr.bf16.mxu0 %v102
  %284 = vmatmul.mubr.bf16.gmra.mxu0 %v101
  %v285 = vpop.f32.mrf.mxu0
  %v286 = vadd.f32 %v94, %v285
  %v287 = vpop.f32.mrf.mxu0
  %v288 = vpop.f32.mrf.mxu0
  %v289 = vpop.f32.mrf.mxu0
  %290 = vdwg.mxu0
  %291 = vmatprep.subr.bf16.mxu0 0
  %292 = vmatpush1.bf16.msra.mxu0 %v226
  %293 = vmatprep.subr.bf16.mxu0 0
  %294 = vmatpush1.bf16.msra.mxu0 %v225
  %295 = vmatprep.subr.bf16.mxu0 0
  %296 = vmatpush1.bf16.msra.mxu0 %v224
  %297 = vmatprep.subr.bf16.mxu0 0
  %298 = vmatpush1.bf16.msra.mxu0 %v223
  %299 = vmatprep.subr.bf16.mxu0 0
  %300 = vmatpush1.bf16.msra.mxu0 %v222
  %301 = vmatprep.subr.bf16.mxu0 0
  %302 = vmatpush1.bf16.msra.mxu0 %v221
  %303 = vmatprep.subr.bf16.mxu0 0
  %304 = vmatpush1.bf16.msra.mxu0 %v220
  %305 = vmatprep.subr.bf16.mxu0 0
  %306 = vmatpush1.bf16.msra.mxu0 %v219
  %307 = vmatprep.subr.bf16.mxu0 0
  %308 = vmatpush2.bf16.msra.mxu0 0
  %309 = vmatprep.subr.bf16.mxu0 0
  %310 = vmatpush2.bf16.msra.mxu0 0
  %311 = vmatprep.subr.bf16.mxu0 0
  %312 = vmatpush2.bf16.msra.mxu0 0
  %313 = vmatprep.subr.bf16.mxu0 0
  %314 = vmatpush2.bf16.msra.mxu0 0
  %315 = vmatprep.subr.bf16.mxu0 0
  %316 = vmatpush2.bf16.msra.mxu0 0
  %317 = vmatprep.subr.bf16.mxu0 0
  %318 = vmatpush2.bf16.msra.mxu0 0
  %319 = vmatprep.subr.bf16.mxu0 0
  %320 = vmatpush2.bf16.msra.mxu0 0
  %321 = vmatprep.subr.bf16.mxu0 0
  %322 = vmatpush2.bf16.msra.mxu0 0
  %323 = vmatprep.mubr.bf16.mxu0 0
  %324 = vmatmul.mubr.bf16.gmra.mxu0 %v103
  %v325 = vpop.f32.mrf.mxu0
  %v326 = vadd.f32 %v286, %v325
  %v327 = vpop.f32.mrf.mxu0
  %v328 = vpop.f32.mrf.mxu0
  %v329 = vpop.f32.mrf.mxu0
  %330 = vdwg.mxu0
  %v331 = vmax.f32 %v326, 0.0
  %v332 = vpack.c.bf16 %v331, %v331
  %v333 = vld [vmem:[%s3] sm:$0xf]
  %v334 = vld [vmem:[%s3 + $0x4] sm:$0xf]
  %v335 = vld [vmem:[%s3 + $0x8] sm:$0xf]
  %v336 = vld [vmem:[%s3 + $0xc] sm:$0xf]
  %v337 = vld [vmem:[%s3 + $0x10] sm:$0xf]
  %v338 = vld [vmem:[%s3 + $0x14] sm:$0xf]
  %v339 = vld [vmem:[%s3 + $0x18] sm:$0xf]
  %v340 = vld [vmem:[%s3 + $0x1c] sm:$0xf]
  %v341 = vld [vmem:[%s3 + $0x20] sm:$0xf]
  %v342 = vld [vmem:[%s3 + $0x24] sm:$0xf]
  %v343 = vld [vmem:[%s3 + $0x28] sm:$0xf]
  %v344 = vld [vmem:[%s3 + $0x2c] sm:$0xf]
  %v345 = vld [vmem:[%s3 + $0x30] sm:$0xf]
  %v346 = vld [vmem:[%s3 + $0x34] sm:$0xf]
  %v347 = vld [vmem:[%s3 + $0x38] sm:$0xf]
  %v348 = vld [vmem:[%s3 + $0x3c] sm:$0xf]
  %v349 = vld [vmem:[%s4] sm:$0x1]
  %v351 = vlaneseq
  %v352 = vshrl.u32 %v351, 7
  %v353 = vsub.s32 0, %v352
  %v354 = vrot.slane %v349, %v353
  %v372 = vunpack.c.l.b16 %v333
  %v373 = vunpack.c.l.b16 %v334
  %v374 = vunpack.c.l.b16 %v335
  %v375 = vunpack.c.l.b16 %v336
  %v376 = vunpack.c.l.b16 %v337
  %v377 = vunpack.c.l.b16 %v338
  %v378 = vunpack.c.l.b16 %v339
  %v379 = vunpack.c.l.b16 %v340
  %v380 = vunpack.c.l.b16 %v341
  %v381 = vunpack.c.l.b16 %v342
  %v382 = vunpack.c.l.b16 %v343
  %v383 = vunpack.c.l.b16 %v344
  %v384 = vunpack.c.l.b16 %v345
  %v385 = vunpack.c.l.b16 %v346
  %v386 = vunpack.c.l.b16 %v347
  %v387 = vunpack.c.l.b16 %v348
  %v388 = vpack.c.b16 %v373, %v372
  %v389 = vpack.c.b16 %v375, %v374
  %v390 = vpack.c.b16 %v377, %v376
  %v391 = vpack.c.b16 %v379, %v378
  %v392 = vpack.c.b16 %v381, %v380
  %v393 = vpack.c.b16 %v383, %v382
  %v394 = vpack.c.b16 %v385, %v384
  %v395 = vpack.c.b16 %v387, %v386
  %404 = vmatprep.subr.bf16.mxu0 0
  %405 = vmatpush1.bf16.msra.mxu0 %v395
  %406 = vmatprep.subr.bf16.mxu0 0
  %407 = vmatpush1.bf16.msra.mxu0 %v394
  %408 = vmatprep.subr.bf16.mxu0 0
  %409 = vmatpush1.bf16.msra.mxu0 %v393
  %410 = vmatprep.subr.bf16.mxu0 0
  %411 = vmatpush1.bf16.msra.mxu0 %v392
  %412 = vmatprep.subr.bf16.mxu0 0
  %413 = vmatpush1.bf16.msra.mxu0 %v391
  %414 = vmatprep.subr.bf16.mxu0 0
  %415 = vmatpush1.bf16.msra.mxu0 %v390
  %416 = vmatprep.subr.bf16.mxu0 0
  %417 = vmatpush1.bf16.msra.mxu0 %v389
  %418 = vmatprep.subr.bf16.mxu0 0
  %419 = vmatpush1.bf16.msra.mxu0 %v388
  %420 = vmatprep.subr.bf16.mxu0 0
  %421 = vmatpush2.bf16.msra.mxu0 0
  %422 = vmatprep.subr.bf16.mxu0 0
  %423 = vmatpush2.bf16.msra.mxu0 0
  %424 = vmatprep.subr.bf16.mxu0 0
  %425 = vmatpush2.bf16.msra.mxu0 0
  %426 = vmatprep.subr.bf16.mxu0 0
  %427 = vmatpush2.bf16.msra.mxu0 0
  %428 = vmatprep.subr.bf16.mxu0 0
  %429 = vmatpush2.bf16.msra.mxu0 0
  %430 = vmatprep.subr.bf16.mxu0 0
  %431 = vmatpush2.bf16.msra.mxu0 0
  %432 = vmatprep.subr.bf16.mxu0 0
  %433 = vmatpush2.bf16.msra.mxu0 0
  %434 = vmatprep.subr.bf16.mxu0 0
  %435 = vmatpush2.bf16.msra.mxu0 0
  %436 = vmatprep.mubr.bf16.mxu0 0
  %437 = vmatmul.mubr.bf16.gmra.mxu0 %v332
  %v438 = vpop.f32.mrf.mxu0
  %v439 = vadd.f32 %v354, %v438
  %v440 = vpop.f32.mrf.mxu0
  %v441 = vpop.f32.mrf.mxu0
  %v442 = vpop.f32.mrf.mxu0
  %443 = vdwg.mxu0
  %v444 = vpack.c.bf16 %v439, %v439
  %v445 = vld [vmem:[%s5] sm:$0xf]
  %v446 = vld [vmem:[%s5 + $0x4] sm:$0xf]
  %v447 = vld [vmem:[%s5 + $0x8] sm:$0xf]
  %v448 = vld [vmem:[%s5 + $0xc] sm:$0xf]
  %v449 = vld [vmem:[%s5 + $0x10] sm:$0xf]
  %v450 = vld [vmem:[%s5 + $0x14] sm:$0xf]
  %v451 = vld [vmem:[%s5 + $0x18] sm:$0xf]
  %v452 = vld [vmem:[%s5 + $0x1c] sm:$0xf]
  %v453 = vld [vmem:[%s5 + $0x20] sm:$0xf]
  %v454 = vld [vmem:[%s5 + $0x24] sm:$0xf]
  %v455 = vld [vmem:[%s5 + $0x28] sm:$0xf]
  %v456 = vld [vmem:[%s5 + $0x2c] sm:$0xf]
  %v457 = vld [vmem:[%s5 + $0x30] sm:$0xf]
  %v458 = vld [vmem:[%s5 + $0x34] sm:$0xf]
  %v459 = vld [vmem:[%s5 + $0x38] sm:$0xf]
  %v460 = vld [vmem:[%s5 + $0x3c] sm:$0xf]
  %v461 = vld [vmem:[%s6] sm:$0x1]
  %v463 = vlaneseq
  %v464 = vshrl.u32 %v463, 7
  %v465 = vsub.s32 0, %v464
  %v466 = vrot.slane %v461, %v465
  %v484 = vunpack.c.l.b16 %v445
  %v485 = vunpack.c.l.b16 %v446
  %v486 = vunpack.c.l.b16 %v447
  %v487 = vunpack.c.l.b16 %v448
  %v488 = vunpack.c.l.b16 %v449
  %v489 = vunpack.c.l.b16 %v450
  %v490 = vunpack.c.l.b16 %v451
  %v491 = vunpack.c.l.b16 %v452
  %v492 = vunpack.c.l.b16 %v453
  %v493 = vunpack.c.l.b16 %v454
  %v494 = vunpack.c.l.b16 %v455
  %v495 = vunpack.c.l.b16 %v456
  %v496 = vunpack.c.l.b16 %v457
  %v497 = vunpack.c.l.b16 %v458
  %v498 = vunpack.c.l.b16 %v459
  %v499 = vunpack.c.l.b16 %v460
  %v500 = vpack.c.b16 %v485, %v484
  %v501 = vpack.c.b16 %v487, %v486
  %v502 = vpack.c.b16 %v489, %v488
  %v503 = vpack.c.b16 %v491, %v490
  %v504 = vpack.c.b16 %v493, %v492
  %v505 = vpack.c.b16 %v495, %v494
  %v506 = vpack.c.b16 %v497, %v496
  %v507 = vpack.c.b16 %v499, %v498
  %516 = vmatprep.subr.bf16.mxu0 0
  %517 = vmatpush1.bf16.msra.mxu0 %v507
  %518 = vmatprep.subr.bf16.mxu0 0
  %519 = vmatpush1.bf16.msra.mxu0 %v506
  %520 = vmatprep.subr.bf16.mxu0 0
  %521 = vmatpush1.bf16.msra.mxu0 %v505
  %522 = vmatprep.subr.bf16.mxu0 0
  %523 = vmatpush1.bf16.msra.mxu0 %v504
  %524 = vmatprep.subr.bf16.mxu0 0
  %525 = vmatpush1.bf16.msra.mxu0 %v503
  %526 = vmatprep.subr.bf16.mxu0 0
  %527 = vmatpush1.bf16.msra.mxu0 %v502
  %528 = vmatprep.subr.bf16.mxu0 0
  %529 = vmatpush1.bf16.msra.mxu0 %v501
  %530 = vmatprep.subr.bf16.mxu0 0
  %531 = vmatpush1.bf16.msra.mxu0 %v500
  %532 = vmatprep.subr.bf16.mxu0 0
  %533 = vmatpush2.bf16.msra.mxu0 0
  %534 = vmatprep.subr.bf16.mxu0 0
  %535 = vmatpush2.bf16.msra.mxu0 0
  %536 = vmatprep.subr.bf16.mxu0 0
  %537 = vmatpush2.bf16.msra.mxu0 0
  %538 = vmatprep.subr.bf16.mxu0 0
  %539 = vmatpush2.bf16.msra.mxu0 0
  %540 = vmatprep.subr.bf16.mxu0 0
  %541 = vmatpush2.bf16.msra.mxu0 0
  %542 = vmatprep.subr.bf16.mxu0 0
  %543 = vmatpush2.bf16.msra.mxu0 0
  %544 = vmatprep.subr.bf16.mxu0 0
  %545 = vmatpush2.bf16.msra.mxu0 0
  %546 = vmatprep.subr.bf16.mxu0 0
  %547 = vmatpush2.bf16.msra.mxu0 0
  %548 = vmatprep.mubr.bf16.mxu0 0
  %549 = vmatmul.mubr.bf16.gmra.mxu0 %v444
  %v550 = vpop.f32.mrf.mxu0
  %v551 = vadd.f32 %v466, %v550
  %v552 = vpop.f32.mrf.mxu0
  %v553 = vpop.f32.mrf.mxu0
  %v554 = vpop.f32.mrf.mxu0
  %555 = vdwg.mxu0
  %v556 = vmax.f32 %v551, 0.0
  %v557 = vpack.c.bf16 %v556, %v556
  %v558 = vld [vmem:[%s7] sm:$0xf]
  %v559 = vld [vmem:[%s7 + $0x4] sm:$0xf]
  %v560 = vld [vmem:[%s7 + $0x8] sm:$0xf]
  %v561 = vld [vmem:[%s7 + $0xc] sm:$0xf]
  %v562 = vld [vmem:[%s7 + $0x10] sm:$0xf]
  %v563 = vld [vmem:[%s7 + $0x14] sm:$0xf]
  %v564 = vld [vmem:[%s7 + $0x18] sm:$0xf]
  %v565 = vld [vmem:[%s7 + $0x1c] sm:$0xf]
  %v566 = vld [vmem:[%s7 + $0x20] sm:$0xf]
  %v567 = vld [vmem:[%s7 + $0x24] sm:$0xf]
  %v568 = vld [vmem:[%s7 + $0x28] sm:$0xf]
  %v569 = vld [vmem:[%s7 + $0x2c] sm:$0xf]
  %v570 = vld [vmem:[%s7 + $0x30] sm:$0xf]
  %v571 = vld [vmem:[%s7 + $0x34] sm:$0xf]
  %v572 = vld [vmem:[%s7 + $0x38] sm:$0xf]
  %v573 = vld [vmem:[%s7 + $0x3c] sm:$0xf]
  %v574 = vld [vmem:[%s8] sm:$0x1]
  %v576 = vlaneseq
  %v577 = vshrl.u32 %v576, 7
  %v578 = vsub.s32 0, %v577
  %v579 = vrot.slane %v574, %v578
  %v597 = vunpack.c.l.b16 %v558
  %v598 = vunpack.c.l.b16 %v559
  %v599 = vunpack.c.l.b16 %v560
  %v600 = vunpack.c.l.b16 %v561
  %v601 = vunpack.c.l.b16 %v562
  %v602 = vunpack.c.l.b16 %v563
  %v603 = vunpack.c.l.b16 %v564
  %v604 = vunpack.c.l.b16 %v565
  %v605 = vunpack.c.l.b16 %v566
  %v606 = vunpack.c.l.b16 %v567
  %v607 = vunpack.c.l.b16 %v568
  %v608 = vunpack.c.l.b16 %v569
  %v609 = vunpack.c.l.b16 %v570
  %v610 = vunpack.c.l.b16 %v571
  %v611 = vunpack.c.l.b16 %v572
  %v612 = vunpack.c.l.b16 %v573
  %v613 = vpack.c.b16 %v598, %v597
  %v614 = vpack.c.b16 %v600, %v599
  %v615 = vpack.c.b16 %v602, %v601
  %v616 = vpack.c.b16 %v604, %v603
  %v617 = vpack.c.b16 %v606, %v605
  %v618 = vpack.c.b16 %v608, %v607
  %v619 = vpack.c.b16 %v610, %v609
  %v620 = vpack.c.b16 %v612, %v611
  %629 = vmatprep.subr.bf16.mxu0 0
  %630 = vmatpush1.bf16.msra.mxu0 %v620
  %631 = vmatprep.subr.bf16.mxu0 0
  %632 = vmatpush1.bf16.msra.mxu0 %v619
  %633 = vmatprep.subr.bf16.mxu0 0
  %634 = vmatpush1.bf16.msra.mxu0 %v618
  %635 = vmatprep.subr.bf16.mxu0 0
  %636 = vmatpush1.bf16.msra.mxu0 %v617
  %637 = vmatprep.subr.bf16.mxu0 0
  %638 = vmatpush1.bf16.msra.mxu0 %v616
  %639 = vmatprep.subr.bf16.mxu0 0
  %640 = vmatpush1.bf16.msra.mxu0 %v615
  %641 = vmatprep.subr.bf16.mxu0 0
  %642 = vmatpush1.bf16.msra.mxu0 %v614
  %643 = vmatprep.subr.bf16.mxu0 0
  %644 = vmatpush1.bf16.msra.mxu0 %v613
  %645 = vmatprep.subr.bf16.mxu0 0
  %646 = vmatpush2.bf16.msra.mxu0 0
  %647 = vmatprep.subr.bf16.mxu0 0
  %648 = vmatpush2.bf16.msra.mxu0 0
  %649 = vmatprep.subr.bf16.mxu0 0
  %650 = vmatpush2.bf16.msra.mxu0 0
  %651 = vmatprep.subr.bf16.mxu0 0
  %652 = vmatpush2.bf16.msra.mxu0 0
  %653 = vmatprep.subr.bf16.mxu0 0
  %654 = vmatpush2.bf16.msra.mxu0 0
  %655 = vmatprep.subr.bf16.mxu0 0
  %656 = vmatpush2.bf16.msra.mxu0 0
  %657 = vmatprep.subr.bf16.mxu0 0
  %658 = vmatpush2.bf16.msra.mxu0 0
  %659 = vmatprep.subr.bf16.mxu0 0
  %660 = vmatpush2.bf16.msra.mxu0 0
  %661 = vmatprep.mubr.bf16.mxu0 0
  %662 = vmatmul.mubr.bf16.gmra.mxu0 %v557
  %v663 = vpop.f32.mrf.mxu0
  %v664 = vadd.f32 %v579, %v663
  %v665 = vpop.f32.mrf.mxu0
  %v666 = vpop.f32.mrf.mxu0
  %v667 = vpop.f32.mrf.mxu0
  %668 = vdwg.mxu0
  %v669 = vmax.f32 %v664, 0.0
  %v670 = vpack.c.bf16 %v669, %v669
  %v671 = vld [vmem:[%s9] sm:$0xf]
  %v672 = vld [vmem:[%s9 + $0x4] sm:$0xf]
  %v673 = vld [vmem:[%s9 + $0x8] sm:$0xf]
  %v674 = vld [vmem:[%s9 + $0xc] sm:$0xf]
  %v675 = vld [vmem:[%s9 + $0x10] sm:$0xf]
  %v676 = vld [vmem:[%s9 + $0x14] sm:$0xf]
  %v677 = vld [vmem:[%s9 + $0x18] sm:$0xf]
  %v678 = vld [vmem:[%s9 + $0x1c] sm:$0xf]
  %v679 = vld [vmem:[%s9 + $0x20] sm:$0xf]
  %v680 = vld [vmem:[%s9 + $0x24] sm:$0xf]
  %v681 = vld [vmem:[%s9 + $0x28] sm:$0xf]
  %v682 = vld [vmem:[%s9 + $0x2c] sm:$0xf]
  %v683 = vld [vmem:[%s9 + $0x30] sm:$0xf]
  %v684 = vld [vmem:[%s9 + $0x34] sm:$0xf]
  %v685 = vld [vmem:[%s9 + $0x38] sm:$0xf]
  %v686 = vld [vmem:[%s9 + $0x3c] sm:$0xf]
  %v687 = vld [vmem:[%s10] sm:$0x1]
  %v689 = vlaneseq
  %v690 = vshrl.u32 %v689, 7
  %v691 = vsub.s32 0, %v690
  %v692 = vrot.slane %v687, %v691
  %v710 = vunpack.c.l.b16 %v671
  %v711 = vunpack.c.l.b16 %v672
  %v712 = vunpack.c.l.b16 %v673
  %v713 = vunpack.c.l.b16 %v674
  %v714 = vunpack.c.l.b16 %v675
  %v715 = vunpack.c.l.b16 %v676
  %v716 = vunpack.c.l.b16 %v677
  %v717 = vunpack.c.l.b16 %v678
  %v718 = vunpack.c.l.b16 %v679
  %v719 = vunpack.c.l.b16 %v680
  %v720 = vunpack.c.l.b16 %v681
  %v721 = vunpack.c.l.b16 %v682
  %v722 = vunpack.c.l.b16 %v683
  %v723 = vunpack.c.l.b16 %v684
  %v724 = vunpack.c.l.b16 %v685
  %v725 = vunpack.c.l.b16 %v686
  %v726 = vpack.c.b16 %v711, %v710
  %v727 = vpack.c.b16 %v713, %v712
  %v728 = vpack.c.b16 %v715, %v714
  %v729 = vpack.c.b16 %v717, %v716
  %v730 = vpack.c.b16 %v719, %v718
  %v731 = vpack.c.b16 %v721, %v720
  %v732 = vpack.c.b16 %v723, %v722
  %v733 = vpack.c.b16 %v725, %v724
  %742 = vmatprep.subr.bf16.mxu0 0
  %743 = vmatpush1.bf16.msra.mxu0 %v733
  %744 = vmatprep.subr.bf16.mxu0 0
  %745 = vmatpush1.bf16.msra.mxu0 %v732
  %746 = vmatprep.subr.bf16.mxu0 0
  %747 = vmatpush1.bf16.msra.mxu0 %v731
  %748 = vmatprep.subr.bf16.mxu0 0
  %749 = vmatpush1.bf16.msra.mxu0 %v730
  %750 = vmatprep.subr.bf16.mxu0 0
  %751 = vmatpush1.bf16.msra.mxu0 %v729
  %752 = vmatprep.subr.bf16.mxu0 0
  %753 = vmatpush1.bf16.msra.mxu0 %v728
  %754 = vmatprep.subr.bf16.mxu0 0
  %755 = vmatpush1.bf16.msra.mxu0 %v727
  %756 = vmatprep.subr.bf16.mxu0 0
  %757 = vmatpush1.bf16.msra.mxu0 %v726
  %758 = vmatprep.subr.bf16.mxu0 0
  %759 = vmatpush2.bf16.msra.mxu0 0
  %760 = vmatprep.subr.bf16.mxu0 0
  %761 = vmatpush2.bf16.msra.mxu0 0
  %762 = vmatprep.subr.bf16.mxu0 0
  %763 = vmatpush2.bf16.msra.mxu0 0
  %764 = vmatprep.subr.bf16.mxu0 0
  %765 = vmatpush2.bf16.msra.mxu0 0
  %766 = vmatprep.subr.bf16.mxu0 0
  %767 = vmatpush2.bf16.msra.mxu0 0
  %768 = vmatprep.subr.bf16.mxu0 0
  %769 = vmatpush2.bf16.msra.mxu0 0
  %770 = vmatprep.subr.bf16.mxu0 0
  %771 = vmatpush2.bf16.msra.mxu0 0
  %772 = vmatprep.subr.bf16.mxu0 0
  %773 = vmatpush2.bf16.msra.mxu0 0
  %774 = vmatprep.mubr.bf16.mxu0 0
  %775 = vmatmul.mubr.bf16.gmra.mxu0 %v670
  %v776 = vpop.f32.mrf.mxu0
  %v777 = vadd.f32 %v692, %v776
  %v778 = vpop.f32.mrf.mxu0
  %v779 = vpop.f32.mrf.mxu0
  %v780 = vpop.f32.mrf.mxu0
  %781 = vdwg.mxu0
  %v782 = vmax.f32 %v777, 0.0
  %783 = vst [vmem:[%s11] sm:$0xff] %v782
  // Predicated region
  $region46: #{cnn_model_forward.1} parent=0 // pred_check
    _
  $region47: #{cnn_model_forward.1} parent=0 // pred_check_branch
    %785 = sbr.rel (0) target = $region49
  $region48: #{cnn_model_forward.1} parent=0 // pred_region
    _
  $region49: #{cnn_model_forward.1} parent=0 // pred_fallthru
    _
  // Predicated region
  $region50: #{cnn_model_forward.1} parent=0 // pred_check
    _
  $region51: #{cnn_model_forward.1} parent=0 // pred_check_branch
    %787 = sbr.rel (0) target = $region53
  $region52: #{cnn_model_forward.1} parent=0 // pred_region
    _
  $region53: #{cnn_model_forward.1} parent=0 // pred_fallthru
    _

</llo_original>
